<compile_context>
chip_gen: v7x
topology: tpu7x:2x2x1
jax: 0.10.0
libtpu: 0.0.40
codegen_flags: <defaults>
</compile_context>

<pallas_src>
import functools

import jax
import jax.numpy as jnp
from jax.experimental import pallas as pl
from jax.experimental.pallas import tpu as pltpu


def _round_up(a: int, b: int) -> int:
    return ((a + b - 1) // b) * b


def _fused_net_kernel(x_ref, w1_ref, b1_ref, w2_ref, b2_ref, w3_ref, b3_ref, o_ref):
    """out = ((x @ W1 + b1) @ W2 + b2) @ W3 + b3, all inside one kernel body.

    Matmul operands use the (pre-cast) weight dtype; the f32 activation tile is
    cast in-kernel (no wrapper-side astype op). Accumulation is always f32 and
    intermediates never leave VMEM/vregs.
    """
    cdt = w1_ref.dtype  # MXU operand dtype (bf16 by default)

    x = x_ref[...].astype(cdt)
    h = jnp.dot(x, w1_ref[...], preferred_element_type=jnp.float32) + b1_ref[...]
    h = jnp.dot(h.astype(cdt), w2_ref[...], preferred_element_type=jnp.float32) + b2_ref[...]
    h = jnp.dot(h.astype(cdt), w3_ref[...], preferred_element_type=jnp.float32) + b3_ref[...]
    o_ref[...] = h.astype(o_ref.dtype)


def _select_batch_tile(M: int, tm_cap: int) -> int:
    """Pick the batch tile (multiple of 8 sublanes).

    - Tiny batch (< 16): one padded tile; splitting only adds per-step overhead.
    - Otherwise: at least 2 tiles so the "parallel" grid axis can shard across
      v7x's two TensorCores, with the tile capped at tm_cap.
    """
    if M < 16:
        return _round_up(M, 8)
    n_tiles = max(2, -(-M // tm_cap))
    return _round_up(-(-M // n_tiles), 8)


@functools.partial(jax.jit, static_argnames=("num_classes",))
def net_forward(prepared_params, x, *, num_classes=None):
    """Fused forward: fc3(fc2(fc1(x))). Single pallas_call, no per-call casts.

    prepared_params: output of prepare_params() — weights already in the MXU
                     operand dtype, W3/b3 already lane-padded to >=128.
    num_classes:     logical output width (static); padded lanes are sliced off.
    """
    w1, b1 = prepared_params["fc1"]
    w2, b2 = prepared_params["fc2"]
    w3, b3 = prepared_params["fc3"]

    M, K1 = x.shape
    N1 = w1.shape[1]
    N2 = w2.shape[1]
    N3 = w3.shape[1]
    assert w1.shape == (K1, N1) and w2.shape == (N1, N2) and w3.shape == (N2, N3)
    assert b1.shape == (1, N1) and b2.shape == (1, N2) and b3.shape == (1, N3)

    # bf16 operands: big tiles are fine. f32 operands: cap the tile so the
    # x tile + h chain fits the 64-vreg file without spilling.
    tm_cap = 256 if jnp.dtype(w1.dtype).itemsize <= 2 else 128
    tm = _select_batch_tile(M, tm_cap)

    # Pad the batch up to a multiple of the tile (keeps a multi-tile "parallel"
    # grid for ragged batches); rows are sliced off after the call.
    Mp = _round_up(M, tm)
    if Mp != M:
        x = jnp.pad(x, ((0, Mp - M), (0, 0)))

    out = pl.pallas_call(
        _fused_net_kernel,
        out_shape=jax.ShapeDtypeStruct((Mp, N3), x.dtype),
        grid_spec=pltpu.PrefetchScalarGridSpec(
            num_scalar_prefetch=0,
            grid=(Mp // tm,),
            in_specs=[
                pl.BlockSpec((tm, K1), lambda i: (i, 0)),   # x batch tile (f32)
                pl.BlockSpec((K1, N1), lambda i: (0, 0)),   # W1 (VMEM-resident)
                pl.BlockSpec((1, N1), lambda i: (0, 0)),    # b1 (f32)
                pl.BlockSpec((N1, N2), lambda i: (0, 0)),   # W2
                pl.BlockSpec((1, N2), lambda i: (0, 0)),    # b2
                pl.BlockSpec((N2, N3), lambda i: (0, 0)),   # W3 (lane-padded)
                pl.BlockSpec((1, N3), lambda i: (0, 0)),    # b3
            ],
            out_specs=pl.BlockSpec((tm, N3), lambda i: (i, 0)),
        ),
        compiler_params=pltpu.CompilerParams(
            dimension_semantics=("parallel",),  # batch tiles are independent
        ),
    )(x, w1, b1, w2, b2, w3, b3)

    if Mp != M:
        out = out[:M]
    if num_classes is not None and num_classes != N3:
        out = out[:, :num_classes]
    return out


def prepare_params(params, compute_dtype=jnp.bfloat16):
    """One-time prep (hoisted out of the per-call path):
       * cast W1/W2/W3 to the MXU operand dtype (bf16 default),
       * keep biases in f32 (added post-accumulation),
       * pad W3/b3 out to a multiple of 128 lanes so output stores are
         lane-dense (unmasked vst) even for narrow classifier heads.
    """
    w1, b1 = params["fc1"]
    w2, b2 = params["fc2"]
    w3, b3 = params["fc3"]

    n3 = w3.shape[1]
    n3p = _round_up(n3, 128)
    if n3p != n3:
        w3 = jnp.pad(w3, ((0, 0), (0, n3p - n3)))
        b3 = jnp.pad(b3, ((0, 0), (0, n3p - n3)))

    return {
        "fc1": (w1.astype(compute_dtype), b1.astype(jnp.float32)),
        "fc2": (w2.astype(compute_dtype), b2.astype(jnp.float32)),
        "fc3": (w3.astype(compute_dtype), b3.astype(jnp.float32)),
    }


def init_linear_params(key, in_features, out_features, dtype=jnp.float32):
    """Deterministic init matching PyTorch nn.Linear default (uniform +-1/sqrt(in)).

    Weight is stored pre-transposed (in, out) == torch_weight.T; bias is stored
    pre-reshaped to (1, out).
    """
    kw, kb = jax.random.split(key)
    bound = 1.0 / (in_features ** 0.5)
    w_t = jax.random.uniform(
        kw, (in_features, out_features), dtype, minval=-bound, maxval=bound
    )
    b = jax.random.uniform(kb, (1, out_features), dtype, minval=-bound, maxval=bound)
    return w_t, b


def make_net_params(key, input_size, hidden_size, num_classes):
    k1, k2, k3, k4 = jax.random.split(key, 4)
    return {
        "fc1": init_linear_params(k1, input_size, hidden_size * 2),
        "fc2": init_linear_params(k2, hidden_size * 2, hidden_size),
        "fc3": init_linear_params(k3, hidden_size, num_classes),
        # fc4 / relu / Softmax exist in __init__ but are unused in forward.
        "fc4": init_linear_params(k4, hidden_size, hidden_size),
    }


def _reference_forward(params, x, compute_dtype=jnp.float32):
    """Pure-JAX reference with the same operand dtype / f32 accumulation."""
    h = x
    for name in ("fc1", "fc2", "fc3"):
        w_t, b = params[name]
        h = jnp.dot(
            h.astype(compute_dtype),
            w_t.astype(compute_dtype),
            preferred_element_type=jnp.float32,
        ) + b.astype(jnp.float32)
    return h.astype(x.dtype)


if __name__ == "__main__":
    # Small shapes consistent with the module's structure:
    # input_size -> hidden*2 -> hidden -> num_classes
    batch = 8
    input_size = 256
    hidden_size = 64
    num_classes = 128

    key = jax.random.PRNGKey(0)
    kx, kp = jax.random.split(key)

    x = jax.random.normal(kx, (batch, input_size), jnp.float32)
    params = make_net_params(kp, input_size, hidden_size, num_classes)

    # --- default bf16 operand path (v5e/v6e/v7x MXU-native), weights pre-cast once ---
    prep_bf16 = prepare_params(params, jnp.bfloat16)
    out_bf16 = net_forward(prep_bf16, x, num_classes=num_classes)
    jax.block_until_ready(out_bf16)
    ref_bf16 = _reference_forward(params, x, jnp.bfloat16)
    assert out_bf16.shape == (batch, num_classes)
    assert jnp.allclose(out_bf16, ref_bf16, atol=2e-2, rtol=2e-2)

    # --- f32 operand path (strict numerical check; tile capped at 128) ---
    prep_f32 = prepare_params(params, jnp.float32)
    out_f32 = net_forward(prep_f32, x, num_classes=num_classes)
    jax.block_until_ready(out_f32)
    ref_f32 = _reference_forward(params, x, jnp.float32)
    assert out_f32.shape == (batch, num_classes)
    assert jnp.allclose(out_f32, ref_f32, atol=1e-4, rtol=1e-4)

    # --- ragged batch (row padding + >=2-tile "parallel" grid) and a narrow
    #     classifier head (lane padding to 128, sliced back to 10) ---
    batch2, classes2 = 20, 10
    x2 = jax.random.normal(jax.random.PRNGKey(1), (batch2, input_size), jnp.float32)
    params2 = make_net_params(jax.random.PRNGKey(2), input_size, hidden_size, classes2)
    prep2 = prepare_params(params2, jnp.bfloat16)
    out2 = net_forward(prep2, x2, num_classes=classes2)
    jax.block_until_ready(out2)
    ref2 = _reference_forward(params2, x2, jnp.bfloat16)
    assert out2.shape == (batch2, classes2)
    assert jnp.allclose(out2, ref2, atol=2e-2, rtol=2e-2)

    print("KERNEL_OK")
</pallas_src>

<mosaic_0001>
module attributes {stable_mosaic.version = 11 : i64} {
  func.func @_fused_net_kernel(%arg0: i32, %arg1: memref<8x256xf32, #tpu.memory_space<vmem>>, %arg2: memref<256x128xbf16, #tpu.memory_space<vmem>>, %arg3: memref<1x128xf32, #tpu.memory_space<vmem>>, %arg4: memref<128x64xbf16, #tpu.memory_space<vmem>>, %arg5: memref<1x64xf32, #tpu.memory_space<vmem>>, %arg6: memref<64x128xbf16, #tpu.memory_space<vmem>>, %arg7: memref<1x128xf32, #tpu.memory_space<vmem>>, %arg8: memref<8x128xf32, #tpu.memory_space<vmem>>) attributes {dimension_semantics = [#tpu.dimension_semantics<parallel>], iteration_bounds = array<i64: 1>, scalar_prefetch = 0 : i64, scratch_operands = 0 : i64, tpu.core_type = #tpu.core_type<tc>, window_params = [{transform_indices = @transform_0, window_bounds = array<i64: 8, 256>}, {pipeline_mode = #tpu.pipeline_mode<synchronous>, transform_indices = @transform_1, window_bounds = array<i64: 256, 128>}, {pipeline_mode = #tpu.pipeline_mode<synchronous>, transform_indices = @transform_2, window_bounds = array<i64: 1, 128>}, {pipeline_mode = #tpu.pipeline_mode<synchronous>, transform_indices = @transform_3, window_bounds = array<i64: 128, 64>}, {pipeline_mode = #tpu.pipeline_mode<synchronous>, transform_indices = @transform_4, window_bounds = array<i64: 1, 64>}, {pipeline_mode = #tpu.pipeline_mode<synchronous>, transform_indices = @transform_5, window_bounds = array<i64: 64, 128>}, {pipeline_mode = #tpu.pipeline_mode<synchronous>, transform_indices = @transform_6, window_bounds = array<i64: 1, 128>}, {transform_indices = @transform_7, window_bounds = array<i64: 8, 128>}]} {
    %c0 = arith.constant 0 : index
    %c0_0 = arith.constant 0 : index
    %0 = vector.load %arg1[%c0, %c0_0] : memref<8x256xf32, #tpu.memory_space<vmem>>, vector<8x256xf32>
    %1 = arith.truncf %0 : vector<8x256xf32> to vector<8x256xbf16>
    %c0_1 = arith.constant 0 : index
    %c0_2 = arith.constant 0 : index
    %2 = vector.load %arg2[%c0_1, %c0_2] : memref<256x128xbf16, #tpu.memory_space<vmem>>, vector<256x128xbf16>
    %cst = arith.constant dense<0.000000e+00> : vector<8x128xf32>
    %3 = tpu.matmul %1, %2, %cst {dimension_numbers = #tpu.dot_dimension_numbers<[1], [0], [0], [1], [0, 0, 1, 1], [], []>} : vector<8x256xbf16>, vector<256x128xbf16>, vector<8x128xf32> -> vector<8x128xf32>
    %c0_3 = arith.constant 0 : index
    %c0_4 = arith.constant 0 : index
    %4 = vector.load %arg3[%c0_3, %c0_4] : memref<1x128xf32, #tpu.memory_space<vmem>>, vector<1x128xf32>
    %5 = vector.broadcast %4 : vector<1x128xf32> to vector<8x128xf32>
    %6 = arith.addf %3, %5 : vector<8x128xf32>
    %7 = arith.truncf %6 : vector<8x128xf32> to vector<8x128xbf16>
    %c0_5 = arith.constant 0 : index
    %c0_6 = arith.constant 0 : index
    %8 = vector.load %arg4[%c0_5, %c0_6] : memref<128x64xbf16, #tpu.memory_space<vmem>>, vector<128x64xbf16>
    %cst_7 = arith.constant dense<0.000000e+00> : vector<8x64xf32>
    %9 = tpu.matmul %7, %8, %cst_7 {dimension_numbers = #tpu.dot_dimension_numbers<[1], [0], [0], [1], [0, 0, 1, 1], [], []>} : vector<8x128xbf16>, vector<128x64xbf16>, vector<8x64xf32> -> vector<8x64xf32>
    %c0_8 = arith.constant 0 : index
    %c0_9 = arith.constant 0 : index
    %10 = vector.load %arg5[%c0_8, %c0_9] : memref<1x64xf32, #tpu.memory_space<vmem>>, vector<1x64xf32>
    %11 = vector.broadcast %10 : vector<1x64xf32> to vector<8x64xf32>
    %12 = arith.addf %9, %11 : vector<8x64xf32>
    %13 = arith.truncf %12 : vector<8x64xf32> to vector<8x64xbf16>
    %c0_10 = arith.constant 0 : index
    %c0_11 = arith.constant 0 : index
    %14 = vector.load %arg6[%c0_10, %c0_11] : memref<64x128xbf16, #tpu.memory_space<vmem>>, vector<64x128xbf16>
    %cst_12 = arith.constant dense<0.000000e+00> : vector<8x128xf32>
    %15 = tpu.matmul %13, %14, %cst_12 {dimension_numbers = #tpu.dot_dimension_numbers<[1], [0], [0], [1], [0, 0, 1, 1], [], []>} : vector<8x64xbf16>, vector<64x128xbf16>, vector<8x128xf32> -> vector<8x128xf32>
    %c0_13 = arith.constant 0 : index
    %c0_14 = arith.constant 0 : index
    %16 = vector.load %arg7[%c0_13, %c0_14] : memref<1x128xf32, #tpu.memory_space<vmem>>, vector<1x128xf32>
    %17 = vector.broadcast %16 : vector<1x128xf32> to vector<8x128xf32>
    %18 = arith.addf %15, %17 : vector<8x128xf32>
    %c0_15 = arith.constant 0 : index
    %c0_16 = arith.constant 0 : index
    %19 = vector.load %arg8[%c0_15, %c0_16] : memref<8x128xf32, #tpu.memory_space<vmem>>, vector<8x128xf32>
    tpu.vector_store %arg8[%c0_15, %c0_16], %18 {strides = array<i32>} : memref<8x128xf32, #tpu.memory_space<vmem>>, vector<8x128xf32>,
    return
  }
  func.func @transform_0(%arg0: i32) -> (i32, i32) {
    %c0_i32 = arith.constant 0 : i32
    %c0_i32_0 = arith.constant 0 : i32
    return %arg0, %c0_i32 : i32, i32
  }
  func.func @transform_1(%arg0: i32) -> (i32, i32) {
    %c0_i32 = arith.constant 0 : i32
    %c0_i32_0 = arith.constant 0 : i32
    %c0_i32_1 = arith.constant 0 : i32
    return %c0_i32, %c0_i32_0 : i32, i32
  }
  func.func @transform_2(%arg0: i32) -> (i32, i32) {
    %c0_i32 = arith.constant 0 : i32
    %c0_i32_0 = arith.constant 0 : i32
    %c0_i32_1 = arith.constant 0 : i32
    return %c0_i32, %c0_i32_0 : i32, i32
  }
  func.func @transform_3(%arg0: i32) -> (i32, i32) {
    %c0_i32 = arith.constant 0 : i32
    %c0_i32_0 = arith.constant 0 : i32
    %c0_i32_1 = arith.constant 0 : i32
    return %c0_i32, %c0_i32_0 : i32, i32
  }
  func.func @transform_4(%arg0: i32) -> (i32, i32) {
    %c0_i32 = arith.constant 0 : i32
    %c0_i32_0 = arith.constant 0 : i32
    %c0_i32_1 = arith.constant 0 : i32
    return %c0_i32, %c0_i32_0 : i32, i32
  }
  func.func @transform_5(%arg0: i32) -> (i32, i32) {
    %c0_i32 = arith.constant 0 : i32
    %c0_i32_0 = arith.constant 0 : i32
    %c0_i32_1 = arith.constant 0 : i32
    return %c0_i32, %c0_i32_0 : i32, i32
  }
  func.func @transform_6(%arg0: i32) -> (i32, i32) {
    %c0_i32 = arith.constant 0 : i32
    %c0_i32_0 = arith.constant 0 : i32
    %c0_i32_1 = arith.constant 0 : i32
    return %c0_i32, %c0_i32_0 : i32, i32
  }
  func.func @transform_7(%arg0: i32) -> (i32, i32) {
    %c0_i32 = arith.constant 0 : i32
    %c0_i32_0 = arith.constant 0 : i32
    return %arg0, %c0_i32 : i32, i32
  }
}

</mosaic_0001>

<llo_original>
// kernel: net_forward.1
$region0: #{net_forward.1}
  #allocation0 [shape = 'u32[]', space=smem, size = 0x4, offset = 0x4, fixed_abs, tag = 'smem constant byte address 0x4 - core index']
  #allocation1 [shape = 'u32[144,128]{1,0:T(1,128)}', space=vmem, size = 0x12000, scoped, tag = 'internal scratch']
  %s0 = inlined_call_operand.vmem [shape: f32[8,256], index: 0, kind: input, shape index: {}]
  %s1 = inlined_call_operand.hbm [shape: bf16[256,128], index: 1, kind: input, shape index: {}]
  %s2 = inlined_call_operand.vmem [shape: f32[1,128], index: 2, kind: input, shape index: {}]
  %s3 = inlined_call_operand.vmem [shape: bf16[128,64], index: 3, kind: input, shape index: {}]
  %s4 = inlined_call_operand.vmem [shape: f32[1,64], index: 4, kind: input, shape index: {}]
  %s5 = inlined_call_operand.vmem [shape: bf16[64,128], index: 5, kind: input, shape index: {}]
  %s6 = inlined_call_operand.vmem [shape: f32[1,128], index: 6, kind: input, shape index: {}]
  %s7 = inlined_call_operand.hbm [shape: f32[8,128], index: 7, kind: output, shape index: {}]
  %s8 = sld [smem:[#allocation0]]
  $region42: #{net_forward.1} parent=0
    _
  %s10 = ssub.s32 1, %s8
  %s11 = scalar_select 0, %s10, %s8
  $region1: #{net_forward.1} parent=0
    #allocation2 [shape = 'u8[65536]{0}', space=vmem, size = 0x10000, scoped, tag = 'input window, operand 1, single buffered']
    #allocation3 [shape = 's32[1]{0}', space=sflag, size = 0x4, scoped, tag = 'scoped memory for net_forward.1']
    #allocation4 [shape = 's32[1]{0}', space=sflag, size = 0x4, scoped, tag = 'scoped memory for net_forward.1']
    #allocation5 [shape = 'u8[4096]{0}', space=vmem, size = 0x1000, scoped, tag = 'output window, operand 0, single buffered']
    %12 = vsyncpa [#allocation3], 0
    %13 = vsyncpa [#allocation4], 0
    // Predicated region
    $region2: #{net_forward.1} parent=1 // pred_check
      _
    $region3: #{net_forward.1} parent=1 // pred_check_branch
      %15 = sbr.rel (0) target = $region5
    $region4: #{net_forward.1} parent=1 // pred_region
      _
    $region5: #{net_forward.1} parent=1 // pred_fallthru
      _
    // Predicated region
    $region6: #{net_forward.1} parent=1 // pred_check
      _
    $region7: #{net_forward.1} parent=1 // pred_check_branch
      %17 = sbr.rel (0) target = $region9
    $region8: #{net_forward.1} parent=1 // pred_region
      %s19 = ssub.s32 2048, 2048
      %20 = vsyncadd [#allocation3], %s19
      %s21 = sshll.u32 [#allocation2], 4
      %s22 = int_to_ptr.vmem [resolvable:$true] %s21
      %27 = dma.hbm_to_vmem [thread:$0]  %s1, 2048, %s22, [#allocation3], 64, 64, 4
    $region9: #{net_forward.1} parent=1 // pred_fallthru
      _
    // Predicated region
    $region10: #{net_forward.1} parent=1 // pred_check
      _
    $region11: #{net_forward.1} parent=1 // pred_check_branch
      %29 = sbr.rel (0) target = $region13
    $region12: #{net_forward.1} parent=1 // pred_region
      _
    $region13: #{net_forward.1} parent=1 // pred_fallthru
      _
    // Predicated region
    $region14: #{net_forward.1} parent=1 // pred_check
      _
    $region15: #{net_forward.1} parent=1 // pred_check_branch
      %31 = sbr.rel (0) target = $region17
    $region16: #{net_forward.1} parent=1 // pred_region
      _
    $region17: #{net_forward.1} parent=1 // pred_fallthru
      _
    // Predicated region
    $region18: #{net_forward.1} parent=1 // pred_check
      _
    $region19: #{net_forward.1} parent=1 // pred_check_branch
      %33 = sbr.rel (0) target = $region21
    $region20: #{net_forward.1} parent=1 // pred_region
      _
    $region21: #{net_forward.1} parent=1 // pred_fallthru
      _
    // Predicated region
    $region22: #{net_forward.1} parent=1 // pred_check
      _
    $region23: #{net_forward.1} parent=1 // pred_check_branch
      %35 = sbr.rel (0) target = $region25
    $region24: #{net_forward.1} parent=1 // pred_region
      _
    $region25: #{net_forward.1} parent=1 // pred_fallthru
      _
    // Predicated region
    $region26: #{net_forward.1} parent=1 // pred_check
      _
    $region27: #{net_forward.1} parent=1 // pred_check_branch
      %37 = sbr.rel (0) target = $region29
    $region28: #{net_forward.1} parent=1 // pred_region
      _
    $region29: #{net_forward.1} parent=1 // pred_fallthru
      _
    // Predicated region
    $region30: #{net_forward.1} parent=1 // pred_check
      _
    $region31: #{net_forward.1} parent=1 // pred_check_branch
      %39 = sbr.rel (0) target = $region33
    $region32: #{net_forward.1} parent=1 // pred_region
      %40 = dma.done [#allocation3], 2048
    $region33: #{net_forward.1} parent=1 // pred_fallthru
      _
    %v42 = vld [vmem:[%s0] sm:$0xff]
    %v43 = vld [vmem:[%s0 + $0x8] sm:$0xff]
    %v44 = vpack.c.bf16 %v42, %v42
    %v45 = vpack.c.bf16 %v43, %v43
    %v46 = vld [vmem:[#allocation2] sm:$0xf]
    %v47 = vld [vmem:[#allocation2 + $0x4] sm:$0xf]
    %v48 = vld [vmem:[#allocation2 + $0x8] sm:$0xf]
    %v49 = vld [vmem:[#allocation2 + $0xc] sm:$0xf]
    %v50 = vld [vmem:[#allocation2 + $0x10] sm:$0xf]
    %v51 = vld [vmem:[#allocation2 + $0x14] sm:$0xf]
    %v52 = vld [vmem:[#allocation2 + $0x18] sm:$0xf]
    %v53 = vld [vmem:[#allocation2 + $0x1c] sm:$0xf]
    %v54 = vld [vmem:[#allocation2 + $0x20] sm:$0xf]
    %v55 = vld [vmem:[#allocation2 + $0x24] sm:$0xf]
    %v56 = vld [vmem:[#allocation2 + $0x28] sm:$0xf]
    %v57 = vld [vmem:[#allocation2 + $0x2c] sm:$0xf]
    %v58 = vld [vmem:[#allocation2 + $0x30] sm:$0xf]
    %v59 = vld [vmem:[#allocation2 + $0x34] sm:$0xf]
    %v60 = vld [vmem:[#allocation2 + $0x38] sm:$0xf]
    %v61 = vld [vmem:[#allocation2 + $0x3c] sm:$0xf]
    %v62 = vld [vmem:[#allocation2 + $0x40] sm:$0xf]
    %v63 = vld [vmem:[#allocation2 + $0x44] sm:$0xf]
    %v64 = vld [vmem:[#allocation2 + $0x48] sm:$0xf]
    %v65 = vld [vmem:[#allocation2 + $0x4c] sm:$0xf]
    %v66 = vld [vmem:[#allocation2 + $0x50] sm:$0xf]
    %v67 = vld [vmem:[#allocation2 + $0x54] sm:$0xf]
    %v68 = vld [vmem:[#allocation2 + $0x58] sm:$0xf]
    %v69 = vld [vmem:[#allocation2 + $0x5c] sm:$0xf]
    %v70 = vld [vmem:[#allocation2 + $0x60] sm:$0xf]
    %v71 = vld [vmem:[#allocation2 + $0x64] sm:$0xf]
    %v72 = vld [vmem:[#allocation2 + $0x68] sm:$0xf]
    %v73 = vld [vmem:[#allocation2 + $0x6c] sm:$0xf]
    %v74 = vld [vmem:[#allocation2 + $0x70] sm:$0xf]
    %v75 = vld [vmem:[#allocation2 + $0x74] sm:$0xf]
    %v76 = vld [vmem:[#allocation2 + $0x78] sm:$0xf]
    %v77 = vld [vmem:[#allocation2 + $0x7c] sm:$0xf]
    %v78 = vld [vmem:[%s2] sm:$0x1]
    %v80 = vlaneseq
    %v81 = vshrl.u32 %v80, 7
    %v82 = vsub.s32 0, %v81
    %v83 = vrot.slane %v78, %v82
    %v117 = vunpack.c.l.b16 %v46
    %v118 = vunpack.c.l.b16 %v47
    %v119 = vunpack.c.l.b16 %v48
    %v120 = vunpack.c.l.b16 %v49
    %v121 = vunpack.c.l.b16 %v50
    %v122 = vunpack.c.l.b16 %v51
    %v123 = vunpack.c.l.b16 %v52
    %v124 = vunpack.c.l.b16 %v53
    %v125 = vunpack.c.l.b16 %v54
    %v126 = vunpack.c.l.b16 %v55
    %v127 = vunpack.c.l.b16 %v56
    %v128 = vunpack.c.l.b16 %v57
    %v129 = vunpack.c.l.b16 %v58
    %v130 = vunpack.c.l.b16 %v59
    %v131 = vunpack.c.l.b16 %v60
    %v132 = vunpack.c.l.b16 %v61
    %v133 = vunpack.c.l.b16 %v62
    %v134 = vunpack.c.l.b16 %v63
    %v135 = vunpack.c.l.b16 %v64
    %v136 = vunpack.c.l.b16 %v65
    %v137 = vunpack.c.l.b16 %v66
    %v138 = vunpack.c.l.b16 %v67
    %v139 = vunpack.c.l.b16 %v68
    %v140 = vunpack.c.l.b16 %v69
    %v141 = vunpack.c.l.b16 %v70
    %v142 = vunpack.c.l.b16 %v71
    %v143 = vunpack.c.l.b16 %v72
    %v144 = vunpack.c.l.b16 %v73
    %v145 = vunpack.c.l.b16 %v74
    %v146 = vunpack.c.l.b16 %v75
    %v147 = vunpack.c.l.b16 %v76
    %v148 = vunpack.c.l.b16 %v77
    %v149 = vpack.c.b16 %v118, %v117
    %v150 = vpack.c.b16 %v120, %v119
    %v151 = vpack.c.b16 %v122, %v121
    %v152 = vpack.c.b16 %v124, %v123
    %v153 = vpack.c.b16 %v126, %v125
    %v154 = vpack.c.b16 %v128, %v127
    %v155 = vpack.c.b16 %v130, %v129
    %v156 = vpack.c.b16 %v132, %v131
    %v157 = vpack.c.b16 %v134, %v133
    %v158 = vpack.c.b16 %v136, %v135
    %v159 = vpack.c.b16 %v138, %v137
    %v160 = vpack.c.b16 %v140, %v139
    %v161 = vpack.c.b16 %v142, %v141
    %v162 = vpack.c.b16 %v144, %v143
    %v163 = vpack.c.b16 %v146, %v145
    %v164 = vpack.c.b16 %v148, %v147
    %181 = vmatprep.subr.bf16.mxu0 0
    %182 = vmatpush1.bf16.msra.mxu0 %v149
    %183 = vmatprep.subr.bf16.mxu0 0
    %184 = vmatpush1.bf16.msra.mxu0 %v150
    %185 = vmatprep.subr.bf16.mxu0 0
    %186 = vmatpush1.bf16.msra.mxu0 %v151
    %187 = vmatprep.subr.bf16.mxu0 0
    %188 = vmatpush1.bf16.msra.mxu0 %v152
    %189 = vmatprep.subr.bf16.mxu0 0
    %190 = vmatpush1.bf16.msra.mxu0 %v153
    %191 = vmatprep.subr.bf16.mxu0 0
    %192 = vmatpush1.bf16.msra.mxu0 %v154
    %193 = vmatprep.subr.bf16.mxu0 0
    %194 = vmatpush1.bf16.msra.mxu0 %v155
    %195 = vmatprep.subr.bf16.mxu0 0
    %196 = vmatpush1.bf16.msra.mxu0 %v156
    %197 = vmatprep.subr.bf16.mxu0 0
    %198 = vmatpush1.bf16.msra.mxu0 %v157
    %199 = vmatprep.subr.bf16.mxu0 0
    %200 = vmatpush1.bf16.msra.mxu0 %v158
    %201 = vmatprep.subr.bf16.mxu0 0
    %202 = vmatpush1.bf16.msra.mxu0 %v159
    %203 = vmatprep.subr.bf16.mxu0 0
    %204 = vmatpush1.bf16.msra.mxu0 %v160
    %205 = vmatprep.subr.bf16.mxu0 0
    %206 = vmatpush1.bf16.msra.mxu0 %v161
    %207 = vmatprep.subr.bf16.mxu0 0
    %208 = vmatpush1.bf16.msra.mxu0 %v162
    %209 = vmatprep.subr.bf16.mxu0 0
    %210 = vmatpush1.bf16.msra.mxu0 %v163
    %211 = vmatprep.subr.bf16.mxu0 0
    %212 = vmatpush1.bf16.msra.mxu0 %v164
    %213 = vmatprep.mubr.bf16.mxu0 %v45
    %214 = vmatmul.mubr.bf16.gmra.mrb[0].mxu0 %v44
    %v215 = vpop.f32.mrb[0].mxu0
    %v216 = vadd.f32 %v83, %v215
    %v217 = vpop.f32.mrb[0].mxu0
    %v218 = vpop.f32.mrb[0].mxu0
    %v219 = vpop.f32.mrb[0].mxu0
    %220 = vdwg.mxu0
    %v221 = vpack.c.bf16 %v216, %v216
    %v222 = vld [vmem:[%s3] sm:$0xf]
    %v223 = vld [vmem:[%s3 + $0x4] sm:$0xf]
    %v224 = vld [vmem:[%s3 + $0x8] sm:$0xf]
    %v225 = vld [vmem:[%s3 + $0xc] sm:$0xf]
    %v226 = vld [vmem:[%s3 + $0x10] sm:$0xf]
    %v227 = vld [vmem:[%s3 + $0x14] sm:$0xf]
    %v228 = vld [vmem:[%s3 + $0x18] sm:$0xf]
    %v229 = vld [vmem:[%s3 + $0x1c] sm:$0xf]
    %v230 = vld [vmem:[%s3 + $0x20] sm:$0xf]
    %v231 = vld [vmem:[%s3 + $0x24] sm:$0xf]
    %v232 = vld [vmem:[%s3 + $0x28] sm:$0xf]
    %v233 = vld [vmem:[%s3 + $0x2c] sm:$0xf]
    %v234 = vld [vmem:[%s3 + $0x30] sm:$0xf]
    %v235 = vld [vmem:[%s3 + $0x34] sm:$0xf]
    %v236 = vld [vmem:[%s3 + $0x38] sm:$0xf]
    %v237 = vld [vmem:[%s3 + $0x3c] sm:$0xf]
    %v238 = vld [vmem:[%s4] sm:$0x1]
    %v240 = vlaneseq
    %v241 = vshrl.u32 %v240, 7
    %v242 = vsub.s32 0, %v241
    %v243 = vrot.slane %v238, %v242
    %v261 = vunpack.c.l.b16 %v222
    %v262 = vunpack.c.l.b16 %v223
    %v263 = vunpack.c.l.b16 %v224
    %v264 = vunpack.c.l.b16 %v225
    %v265 = vunpack.c.l.b16 %v226
    %v266 = vunpack.c.l.b16 %v227
    %v267 = vunpack.c.l.b16 %v228
    %v268 = vunpack.c.l.b16 %v229
    %v269 = vunpack.c.l.b16 %v230
    %v270 = vunpack.c.l.b16 %v231
    %v271 = vunpack.c.l.b16 %v232
    %v272 = vunpack.c.l.b16 %v233
    %v273 = vunpack.c.l.b16 %v234
    %v274 = vunpack.c.l.b16 %v235
    %v275 = vunpack.c.l.b16 %v236
    %v276 = vunpack.c.l.b16 %v237
    %v277 = vpack.c.b16 %v262, %v261
    %v278 = vpack.c.b16 %v264, %v263
    %v279 = vpack.c.b16 %v266, %v265
    %v280 = vpack.c.b16 %v268, %v267
    %v281 = vpack.c.b16 %v270, %v269
    %v282 = vpack.c.b16 %v272, %v271
    %v283 = vpack.c.b16 %v274, %v273
    %v284 = vpack.c.b16 %v276, %v275
    %293 = vmatprep.subr.bf16.mxu0 0
    %294 = vmatpush1.bf16.msra.mxu0 %v277
    %295 = vmatprep.subr.bf16.mxu0 0
    %296 = vmatpush1.bf16.msra.mxu0 %v278
    %297 = vmatprep.subr.bf16.mxu0 0
    %298 = vmatpush1.bf16.msra.mxu0 %v279
    %299 = vmatprep.subr.bf16.mxu0 0
    %300 = vmatpush1.bf16.msra.mxu0 %v280
    %301 = vmatprep.subr.bf16.mxu0 0
    %302 = vmatpush1.bf16.msra.mxu0 %v281
    %303 = vmatprep.subr.bf16.mxu0 0
    %304 = vmatpush1.bf16.msra.mxu0 %v282
    %305 = vmatprep.subr.bf16.mxu0 0
    %306 = vmatpush1.bf16.msra.mxu0 %v283
    %307 = vmatprep.subr.bf16.mxu0 0
    %308 = vmatpush1.bf16.msra.mxu0 %v284
    %309 = vmatprep.subr.bf16.mxu0 0
    %310 = vmatpush1.bf16.msra.mxu0 0
    %311 = vmatprep.subr.bf16.mxu0 0
    %312 = vmatpush1.bf16.msra.mxu0 0
    %313 = vmatprep.subr.bf16.mxu0 0
    %314 = vmatpush1.bf16.msra.mxu0 0
    %315 = vmatprep.subr.bf16.mxu0 0
    %316 = vmatpush1.bf16.msra.mxu0 0
    %317 = vmatprep.subr.bf16.mxu0 0
    %318 = vmatpush1.bf16.msra.mxu0 0
    %319 = vmatprep.subr.bf16.mxu0 0
    %320 = vmatpush1.bf16.msra.mxu0 0
    %321 = vmatprep.subr.bf16.mxu0 0
    %322 = vmatpush1.bf16.msra.mxu0 0
    %323 = vmatprep.subr.bf16.mxu0 0
    %324 = vmatpush1.bf16.msra.mxu0 0
    %325 = vmatprep.mubr.bf16.mxu0 0
    %326 = vmatmul.mubr.bf16.gmra.mrb[0].mxu0 %v221
    %v327 = vpop.f32.mrb[0].mxu0
    %v328 = vadd.f32 %v243, %v327
    %v329 = vpop.f32.mrb[0].mxu0
    %v330 = vpop.f32.mrb[0].mxu0
    %v331 = vpop.f32.mrb[0].mxu0
    %332 = vdwg.mxu0
    %v333 = vpack.c.bf16 %v328, %v328
    %v334 = vld [vmem:[%s5] sm:$0xf]
    %v335 = vld [vmem:[%s5 + $0x4] sm:$0xf]
    %v336 = vld [vmem:[%s5 + $0x8] sm:$0xf]
    %v337 = vld [vmem:[%s5 + $0xc] sm:$0xf]
    %v338 = vld [vmem:[%s5 + $0x10] sm:$0xf]
    %v339 = vld [vmem:[%s5 + $0x14] sm:$0xf]
    %v340 = vld [vmem:[%s5 + $0x18] sm:$0xf]
    %v341 = vld [vmem:[%s5 + $0x1c] sm:$0xf]
    %v342 = vld [vmem:[%s6] sm:$0x1]
    %v344 = vlaneseq
    %v345 = vshrl.u32 %v344, 7
    %v346 = vsub.s32 0, %v345
    %v347 = vrot.slane %v342, %v346
    %v357 = vunpack.c.l.b16 %v334
    %v358 = vunpack.c.l.b16 %v335
    %v359 = vunpack.c.l.b16 %v336
    %v360 = vunpack.c.l.b16 %v337
    %v361 = vunpack.c.l.b16 %v338
    %v362 = vunpack.c.l.b16 %v339
    %v363 = vunpack.c.l.b16 %v340
    %v364 = vunpack.c.l.b16 %v341
    %v365 = vpack.c.b16 %v358, %v357
    %v366 = vpack.c.b16 %v360, %v359
    %v367 = vpack.c.b16 %v362, %v361
    %v368 = vpack.c.b16 %v364, %v363
    %vm373 = vcmask 523264
    %v375 = vsel %vm373, %v333, 0
    %377 = vmatprep.subr.bf16.mxu0 0
    %378 = vmatpush1.bf16.msra.mxu0 %v365
    %379 = vmatprep.subr.bf16.mxu0 0
    %380 = vmatpush1.bf16.msra.mxu0 %v366
    %381 = vmatprep.subr.bf16.mxu0 0
    %382 = vmatpush1.bf16.msra.mxu0 %v367
    %383 = vmatprep.subr.bf16.mxu0 0
    %384 = vmatpush1.bf16.msra.mxu0 %v368
    %385 = vmatprep.subr.bf16.mxu0 0
    %386 = vmatpush1.bf16.msra.mxu0 0
    %387 = vmatprep.subr.bf16.mxu0 0
    %388 = vmatpush1.bf16.msra.mxu0 0
    %389 = vmatprep.subr.bf16.mxu0 0
    %390 = vmatpush1.bf16.msra.mxu0 0
    %391 = vmatprep.subr.bf16.mxu0 0
    %392 = vmatpush1.bf16.msra.mxu0 0
    %393 = vmatprep.subr.bf16.mxu0 0
    %394 = vmatpush1.bf16.msra.mxu0 0
    %395 = vmatprep.subr.bf16.mxu0 0
    %396 = vmatpush1.bf16.msra.mxu0 0
    %397 = vmatprep.subr.bf16.mxu0 0
    %398 = vmatpush1.bf16.msra.mxu0 0
    %399 = vmatprep.subr.bf16.mxu0 0
    %400 = vmatpush1.bf16.msra.mxu0 0
    %401 = vmatprep.subr.bf16.mxu0 0
    %402 = vmatpush1.bf16.msra.mxu0 0
    %403 = vmatprep.subr.bf16.mxu0 0
    %404 = vmatpush1.bf16.msra.mxu0 0
    %405 = vmatprep.subr.bf16.mxu0 0
    %406 = vmatpush1.bf16.msra.mxu0 0
    %407 = vmatprep.subr.bf16.mxu0 0
    %408 = vmatpush1.bf16.msra.mxu0 0
    %409 = vmatprep.mubr.bf16.mxu0 0
    %410 = vmatmul.mubr.bf16.gmra.mrb[0].mxu0 %v375
    %v411 = vpop.f32.mrb[0].mxu0
    %v412 = vadd.f32 %v347, %v411
    %v413 = vpop.f32.mrb[0].mxu0
    %v414 = vpop.f32.mrb[0].mxu0
    %v415 = vpop.f32.mrb[0].mxu0
    %416 = vdwg.mxu0
    %417 = vst [vmem:[#allocation5] sm:$0xff] %v412
    // Predicated region
    $region34: #{net_forward.1} parent=1 // pred_check
      _
    $region35: #{net_forward.1} parent=1 // pred_check_branch
      %419 = sbr.rel (0) target = $region37
    $region36: #{net_forward.1} parent=1 // pred_region
      %s421 = ssub.s32 128, 128
      %422 = vsyncadd [#allocation4], %s421
      %s424 = sshll.u32 [#allocation5], 4
      %s425 = int_to_ptr.vmem [resolvable:$true] %s424
      %427 = dma.vmem_to_hbm [thread:$0]  %s425, 128, %s7, [#allocation4]
    $region37: #{net_forward.1} parent=1 // pred_fallthru
      _
    // Predicated region
    $region38: #{net_forward.1} parent=1 // pred_check
      _
    $region39: #{net_forward.1} parent=1 // pred_check_branch
      %429 = sbr.rel (0) target = $region41
    $region40: #{net_forward.1} parent=1 // pred_region
      %430 = dma.done [#allocation4], 128
    $region41: #{net_forward.1} parent=1 // pred_fallthru
      _
    %431 = vsyncpa [#allocation3], 1
    %432 = vsyncpa [#allocation4], 1

</llo_original>
